<compile_context>
chip_gen: v7x
topology: tpu7x:2x2x1
jax: 0.10.0
libtpu: 0.0.40
codegen_flags: <defaults>
</compile_context>

<pallas_src>
import math

import jax
import jax.numpy as jnp
from jax import lax
from jax.experimental import pallas as pl
from jax.experimental.pallas import tpu as pltpu


_VMEM_LIMIT = 64 * 1024 * 1024   # raise scoped-VMEM cap (v5e default ~16 MiB)


# ------------------------------ small helpers --------------------------------

def _round_up(n, k):
    return ((n + k - 1) // k) * k


def _row_tile(r):
    # sublane-aligned row tiles (multiples of 8), capped for VMEM headroom
    for t in (256, 128, 64, 32, 16, 8):
        if r >= t:
            return t
    return 8


def _bh_tile(bh):
    # largest divisor of bh <= 8, preferring >= 2 grid steps (megacore / pipelining)
    cap = max(1, min(8, bh // 2)) if bh > 1 else 1
    for t in range(cap, 0, -1):
        if bh % t == 0:
            return t
    return 1


# ----------------------------- in-kernel helpers ------------------------------

def _erf(x):
    # Abramowitz & Stegun 7.1.26 rational approximation (~1.5e-7 abs err).
    # TODO(synk): nn.GELU uses exact erf; f32-accurate polynomial erf used here.
    a1, a2, a3, a4, a5 = 0.254829592, -0.284496736, 1.421413741, -1.453152027, 1.061405429
    p = 0.3275911
    s = jnp.sign(x)
    ax = jnp.abs(x)
    t = pl.reciprocal(1.0 + p * ax)            # divide -> EUP slot
    poly = ((((a5 * t + a4) * t + a3) * t + a2) * t + a1) * t
    return s * (1.0 - poly * jnp.exp(-ax * ax))


def _gelu(x):
    return 0.5 * x * (1.0 + _erf(x * 0.7071067811865476))


def _softmax_lastdim(x, approx=False):
    mx = jnp.max(x, axis=-1, keepdims=True)
    e = jnp.exp(x - mx)
    s = jnp.sum(e, axis=-1, keepdims=True)
    return e * pl.reciprocal(s, approx=approx)


# --------------------------------- kernels ------------------------------------

def _make_ln_qkv_kernel(scale, use_bf16):
    """Fused LayerNorm1 + qkv projection; emits q (pre-scaled), k, v separately.
    qkv_bias=False -> no bias adds / bias DMA (perf review item)."""
    mmt = jnp.bfloat16 if use_bf16 else jnp.float32

    def kernel(x_ref, g_ref, b_ref, wq_ref, wk_ref, wv_ref, q_ref, k_ref, v_ref):
        x = x_ref[...]                                   # (TR, C) f32
        mu = jnp.mean(x, axis=-1, keepdims=True)
        var = jnp.mean(jnp.square(x - mu), axis=-1, keepdims=True)
        xn = (x - mu) * lax.rsqrt(var + 1e-5) * g_ref[...] + b_ref[...]
        lhs = xn.astype(mmt)
        q_ref[...] = (jnp.dot(lhs, wq_ref[...], preferred_element_type=jnp.float32)
                      * scale).astype(q_ref.dtype)
        k_ref[...] = jnp.dot(lhs, wk_ref[...],
                             preferred_element_type=jnp.float32).astype(k_ref.dtype)
        v_ref[...] = jnp.dot(lhs, wv_ref[...],
                             preferred_element_type=jnp.float32).astype(v_ref.dtype)

    return kernel


def _make_nystrom_kernel(m, iters, use_bf16):
    """Nystromformer attention core for one (tile_bh, Np, hd) slab.
    Pooled landmarks ql/kl and the Moore-Penrose initializer z0 (which carries
    the *global* max(col)*max(row) scale) are precomputed and passed in, so the
    kernel is tileable over batch*heads.  No attention-map output."""
    mmt = jnp.bfloat16 if use_bf16 else jnp.float32

    def kernel(q_ref, k_ref, v_ref, ql_ref, kl_ref, z0_ref, o_ref):
        q = q_ref[...]                                   # (T, Np, hd), q already * scale
        k = k_ref[...]
        v = v_ref[...]
        ql = ql_ref[...]                                 # (T, m, hd)
        kl = kl_ref[...]

        def mm(a, b, eq):                                # bf16 MXU, f32 accumulate
            return jnp.einsum(eq, a.astype(mmt), b.astype(mmt),
                              preferred_element_type=jnp.float32)

        sim1 = mm(q, kl, 'bid,bjd->bij')                 # (T, Np, m)
        sim3 = mm(ql, k, 'bid,bjd->bij')                 # (T, m, Np)
        sim2 = jnp.einsum('bid,bjd->bij', ql, kl,        # (T, m, m) — keep f32 for pinv
                          preferred_element_type=jnp.float32)

        attn1 = _softmax_lastdim(sim1, approx=True)
        attn2 = _softmax_lastdim(sim2)
        attn3 = _softmax_lastdim(sim3, approx=True)

        # Moore-Penrose iterative pseudo-inverse of attn2 (init z0 hoisted).
        eye = (lax.broadcasted_iota(jnp.int32, (m, m), 0)
               == lax.broadcasted_iota(jnp.int32, (m, m), 1)).astype(jnp.float32)
        z = z0_ref[...]

        def bmm(a, b):
            return jnp.einsum('bij,bjk->bik', a, b, preferred_element_type=jnp.float32)

        for _ in range(iters):
            xz = bmm(attn2, z)
            t = 7.0 * eye - xz
            t = 15.0 * eye - bmm(xz, t)
            t = 13.0 * eye - bmm(xz, t)
            z = 0.25 * bmm(z, t)

        a12 = bmm(attn1, z)                              # (T, Np, m)
        a3v = mm(attn3, v, 'bij,bjd->bid')               # (T, m, hd)
        out = mm(a12, a3v, 'bij,bjd->bid')               # (T, Np, hd)
        o_ref[...] = out.astype(o_ref.dtype)

    return kernel


def _make_proj_mlp_kernel(use_bf16):
    """Fused: out = x + fc2( gelu( fc1( LN2( proj(y) + b_proj ) ) ) )"""
    mmt = jnp.bfloat16 if use_bf16 else jnp.float32

    def kernel(x_ref, y_ref, wp_ref, bp_ref, g_ref, b_ref,
               w1_ref, b1_ref, w2_ref, b2_ref, o_ref):
        y = y_ref[...].astype(mmt)                       # (TR, C) attention output
        yp = jnp.dot(y, wp_ref[...], preferred_element_type=jnp.float32) + bp_ref[...]
        mu = jnp.mean(yp, axis=-1, keepdims=True)
        var = jnp.mean(jnp.square(yp - mu), axis=-1, keepdims=True)
        yn = (yp - mu) * lax.rsqrt(var + 1e-5) * g_ref[...] + b_ref[...]
        h = jnp.dot(yn.astype(mmt), w1_ref[...],
                    preferred_element_type=jnp.float32) + b1_ref[...]
        h = _gelu(h)
        out = jnp.dot(h.astype(mmt), w2_ref[...],
                      preferred_element_type=jnp.float32) + b2_ref[...]
        o_ref[...] = x_ref[...] + out

    return kernel


# ------------------------------ pallas wrappers --------------------------------

def ln1_qkv(x2d, ln_g, ln_b, wq, wk, wv, *, scale, use_bf16):
    R, C = x2d.shape
    tr = _row_tile(R)
    Rp = _round_up(R, tr)
    if Rp != R:
        x2d = jnp.pad(x2d, ((0, Rp - R), (0, 0)))
    kernel = _make_ln_qkv_kernel(scale, use_bf16)
    row = pl.BlockSpec((tr, C), lambda i: (i, 0))
    vec = pl.BlockSpec((1, C), lambda i: (0, 0))
    wsp = pl.BlockSpec((C, C), lambda i: (0, 0))
    # TODO(synk): emit q/k/v directly in (B*H, Np, hd) head layout from the
    # epilogue (out_spec plumbing) to also drop the JAX-side transpose glue.
    q, k, v = pl.pallas_call(
        kernel,
        out_shape=(jax.ShapeDtypeStruct((Rp, C), jnp.float32),) * 3,
        grid=(Rp // tr,),
        in_specs=[row, vec, vec, wsp, wsp, wsp],
        out_specs=(row,) * 3,
        compiler_params=pltpu.CompilerParams(
            dimension_semantics=("parallel",),
            vmem_limit_bytes=_VMEM_LIMIT),
    )(x2d, ln_g, ln_b, wq, wk, wv)
    return q[:R], k[:R], v[:R]


def nystrom_attention(q, k, v, ql, kl, z0, *, m, iters, use_bf16):
    bh, npad, hd = q.shape
    t = _bh_tile(bh)
    kernel = _make_nystrom_kernel(m, iters, use_bf16)
    big = pl.BlockSpec((t, npad, hd), lambda i: (i, 0, 0))
    lmk = pl.BlockSpec((t, m, hd), lambda i: (i, 0, 0))
    sq = pl.BlockSpec((t, m, m), lambda i: (i, 0, 0))
    return pl.pallas_call(
        kernel,
        out_shape=jax.ShapeDtypeStruct((bh, npad, hd), jnp.float32),
        grid=(bh // t,),
        in_specs=[big, big, big, lmk, lmk, sq],
        out_specs=big,
        compiler_params=pltpu.CompilerParams(
            dimension_semantics=("parallel",),
            vmem_limit_bytes=_VMEM_LIMIT),
    )(q, k, v, ql, kl, z0)


def proj_mlp_residual(x2d, y2d, wp, bp, g, b, w1, b1, w2, b2, *, use_bf16):
    R, C = x2d.shape
    H = w1.shape[1]
    tr = _row_tile(R)
    Rp = _round_up(R, tr)
    if Rp != R:
        x2d = jnp.pad(x2d, ((0, Rp - R), (0, 0)))
        y2d = jnp.pad(y2d, ((0, Rp - R), (0, 0)))
    kernel = _make_proj_mlp_kernel(use_bf16)
    row = pl.BlockSpec((tr, C), lambda i: (i, 0))
    # TODO(synk): for real widths on v7x (64 MiB VMEM), single-buffer the
    # constant-index weight blocks (pl.Buffered(1)) or K-tile the matmuls.
    out = pl.pallas_call(
        kernel,
        out_shape=jax.ShapeDtypeStruct((Rp, C), jnp.float32),
        grid=(Rp // tr,),
        in_specs=[row, row,
                  pl.BlockSpec((C, C), lambda i: (0, 0)),
                  pl.BlockSpec((1, C), lambda i: (0, 0)),
                  pl.BlockSpec((1, C), lambda i: (0, 0)),
                  pl.BlockSpec((1, C), lambda i: (0, 0)),
                  pl.BlockSpec((C, H), lambda i: (0, 0)),
                  pl.BlockSpec((1, H), lambda i: (0, 0)),
                  pl.BlockSpec((H, C), lambda i: (0, 0)),
                  pl.BlockSpec((1, C), lambda i: (0, 0))],
        out_specs=row,
        compiler_params=pltpu.CompilerParams(
            dimension_semantics=("parallel",),
            vmem_limit_bytes=_VMEM_LIMIT),
    )(x2d, y2d, wp, bp, g, b, w1, b1, w2, b2)
    return out[:R]


# ------------------------- tiny plain-JAX pre-pass ------------------------------

def _landmarks_and_pinv_init(qh, kh, m, l):
    """Landmark pooling (reshape+mean, replaces the old P matmul) and the
    Moore-Penrose initializer z0 = attn2^T / (max(col) * max(row)).
    The max is GLOBAL over all batch*head matrices (matches the reference),
    which couples every tile — that is why this lives outside the bh-tiled
    kernel; ql/kl are reused as kernel inputs so pooling happens exactly once."""
    bh, npad, hd = qh.shape
    ql = qh.reshape(bh, m, l, hd).mean(axis=2)
    kl = kh.reshape(bh, m, l, hd).mean(axis=2)
    sim2 = jnp.einsum('bid,bjd->bij', ql, kl)
    attn2 = jax.nn.softmax(sim2, axis=-1)
    c = (jnp.max(jnp.sum(jnp.abs(attn2), axis=-1)) *
         jnp.max(jnp.sum(jnp.abs(attn2), axis=-2)))
    z0 = jnp.swapaxes(attn2, -1, -2) / c
    return ql, kl, z0


# ------------------------------- Block forward ----------------------------------

def block_forward(x, params, *, num_heads, num_landmarks, pinv_iterations=6,
                  use_bf16=True):
    B, N, C = x.shape
    H = num_heads
    hd = C // H
    m = num_landmarks
    pad = (m - N % m) % m
    Np = N + pad
    l = Np // m
    scale = hd ** -0.5

    wdt = jnp.bfloat16 if use_bf16 else jnp.float32
    wq, wk, wv = (w.astype(wdt) for w in jnp.split(params['w_qkv'], 3, axis=1))
    wp = params['w_proj'].astype(wdt)
    w1 = params['w_fc1'].astype(wdt)
    w2 = params['w_fc2'].astype(wdt)

    # --- fused LayerNorm1 + qkv (q pre-scaled, no qkv bias) over flattened rows ---
    x2d = x.reshape(B * N, C)
    q2d, k2d, v2d = ln1_qkv(x2d, params['ln1_g'], params['ln1_b'], wq, wk, wv,
                            scale=scale, use_bf16=use_bf16)

    # layout glue: left-pad the sequence (qkv of zero-padded LN rows is 0 since
    # qkv_bias=False, so padding q/k/v after the linear is equivalent) and
    # split heads -> (B*H, Np, hd)
    def to_heads(t2d):
        t = t2d.reshape(B, N, H, hd)
        if pad:
            t = jnp.pad(t, ((0, 0), (pad, 0), (0, 0), (0, 0)))
        return t.transpose(0, 2, 1, 3).reshape(B * H, Np, hd)

    qh, kh, vh = to_heads(q2d), to_heads(k2d), to_heads(v2d)

    ql, kl, z0 = _landmarks_and_pinv_init(qh, kh, m, l)

    oh = nystrom_attention(qh, kh, vh, ql, kl, z0, m=m, iters=pinv_iterations,
                           use_bf16=use_bf16)

    # merge heads, drop the left padding
    y2d = (oh.reshape(B, H, Np, hd).transpose(0, 2, 1, 3)
             .reshape(B, Np, C)[:, -N:].reshape(B * N, C))

    # --- fused proj + LayerNorm2 + MLP(GELU) + residual ---
    out2d = proj_mlp_residual(x2d, y2d, wp, params['b_proj'],
                              params['ln2_g'], params['ln2_b'],
                              w1, params['b_fc1'], w2, params['b_fc2'],
                              use_bf16=use_bf16)
    # TODO(synk): return_attention path (full Np x Np attention map) omitted —
    # Block.forward discards it and at real sizes it dominates VMEM/HBM.
    return out2d.reshape(B, N, C)


# ----------------------------------- main ----------------------------------------

if __name__ == "__main__":
    B, N, C = 2, 7, 32
    num_heads, num_landmarks = 4, 4
    hidden = int(C * 4.0)

    key = jax.random.PRNGKey(0)
    kx, k1, k2, k3, k4 = jax.random.split(key, 5)
    x = jax.random.normal(kx, (B, N, C), jnp.float32)

    def init_w(k, shape, fan_in):
        return jax.random.normal(k, shape, jnp.float32) * (1.0 / math.sqrt(fan_in))

    params = dict(
        ln1_g=jnp.ones((1, C), jnp.float32),
        ln1_b=jnp.zeros((1, C), jnp.float32),
        w_qkv=init_w(k1, (C, 3 * C), C),            # qkv_bias=False
        w_proj=init_w(k2, (C, C), C),
        b_proj=jnp.zeros((1, C), jnp.float32),
        ln2_g=jnp.ones((1, C), jnp.float32),
        ln2_b=jnp.zeros((1, C), jnp.float32),
        w_fc1=init_w(k3, (C, hidden), C),
        b_fc1=jnp.zeros((1, hidden), jnp.float32),
        w_fc2=init_w(k4, (hidden, C), hidden),
        b_fc2=jnp.zeros((1, C), jnp.float32),
    )

    out = block_forward(x, params, num_heads=num_heads, num_landmarks=num_landmarks)
    out = jax.block_until_ready(out)

    assert out.shape == (B, N, C)
    assert bool(jnp.all(jnp.isfinite(out)))
    print("KERNEL_OK")
</pallas_src>

<mosaic_0001>
module attributes {stable_mosaic.version = 11 : i64} {
  func.func @kernel(%arg0: i32, %arg1: memref<8x32xf32, #tpu.memory_space<vmem>>, %arg2: memref<1x32xf32, #tpu.memory_space<vmem>>, %arg3: memref<1x32xf32, #tpu.memory_space<vmem>>, %arg4: memref<32x32xbf16, #tpu.memory_space<vmem>>, %arg5: memref<32x32xbf16, #tpu.memory_space<vmem>>, %arg6: memref<32x32xbf16, #tpu.memory_space<vmem>>, %arg7: memref<8x32xf32, #tpu.memory_space<vmem>>, %arg8: memref<8x32xf32, #tpu.memory_space<vmem>>, %arg9: memref<8x32xf32, #tpu.memory_space<vmem>>) attributes {dimension_semantics = [#tpu.dimension_semantics<parallel>], iteration_bounds = array<i64: 2>, scalar_prefetch = 0 : i64, scratch_operands = 0 : i64, tpu.core_type = #tpu.core_type<tc>, window_params = [{transform_indices = @transform_0, window_bounds = array<i64: 8, 32>}, {pipeline_mode = #tpu.pipeline_mode<synchronous>, transform_indices = @transform_1, window_bounds = array<i64: 1, 32>}, {pipeline_mode = #tpu.pipeline_mode<synchronous>, transform_indices = @transform_2, window_bounds = array<i64: 1, 32>}, {pipeline_mode = #tpu.pipeline_mode<synchronous>, transform_indices = @transform_3, window_bounds = array<i64: 32, 32>}, {pipeline_mode = #tpu.pipeline_mode<synchronous>, transform_indices = @transform_4, window_bounds = array<i64: 32, 32>}, {pipeline_mode = #tpu.pipeline_mode<synchronous>, transform_indices = @transform_5, window_bounds = array<i64: 32, 32>}, {transform_indices = @transform_6, window_bounds = array<i64: 8, 32>}, {transform_indices = @transform_7, window_bounds = array<i64: 8, 32>}, {transform_indices = @transform_8, window_bounds = array<i64: 8, 32>}]} {
    %c0 = arith.constant 0 : index
    %c0_0 = arith.constant 0 : index
    %0 = vector.load %arg1[%c0, %c0_0] : memref<8x32xf32, #tpu.memory_space<vmem>>, vector<8x32xf32>
    %cst = arith.constant dense<0.000000e+00> : vector<8xf32>
    %1 = vector.multi_reduction <add>, %0, %cst [1] : vector<8x32xf32> to vector<8xf32>
    %2 = vector.shape_cast %1 : vector<8xf32> to vector<8x1xf32>
    %cst_1 = arith.constant 3.200000e+01 : f32
    %3 = vector.broadcast %cst_1 : f32 to vector<8x1xf32>
    %4 = arith.divf %2, %3 : vector<8x1xf32>
    %5 = vector.broadcast %4 : vector<8x1xf32> to vector<8x32xf32>
    %6 = arith.subf %0, %5 : vector<8x32xf32>
    %7 = arith.mulf %6, %6 : vector<8x32xf32>
    %cst_2 = arith.constant dense<0.000000e+00> : vector<8xf32>
    %8 = vector.multi_reduction <add>, %7, %cst_2 [1] : vector<8x32xf32> to vector<8xf32>
    %9 = vector.shape_cast %8 : vector<8xf32> to vector<8x1xf32>
    %cst_3 = arith.constant 3.200000e+01 : f32
    %10 = vector.broadcast %cst_3 : f32 to vector<8x1xf32>
    %11 = arith.divf %9, %10 : vector<8x1xf32>
    %12 = vector.broadcast %4 : vector<8x1xf32> to vector<8x32xf32>
    %13 = arith.subf %0, %12 : vector<8x32xf32>
    %cst_4 = arith.constant 9.99999974E-6 : f32
    %14 = vector.broadcast %cst_4 : f32 to vector<8x1xf32>
    %15 = arith.addf %11, %14 : vector<8x1xf32>
    %16 = math.rsqrt %15 : vector<8x1xf32>
    %17 = vector.broadcast %16 : vector<8x1xf32> to vector<8x32xf32>
    %18 = arith.mulf %13, %17 : vector<8x32xf32>
    %c0_5 = arith.constant 0 : index
    %c0_6 = arith.constant 0 : index
    %19 = vector.load %arg2[%c0_5, %c0_6] : memref<1x32xf32, #tpu.memory_space<vmem>>, vector<1x32xf32>
    %20 = vector.broadcast %19 : vector<1x32xf32> to vector<8x32xf32>
    %21 = arith.mulf %18, %20 : vector<8x32xf32>
    %c0_7 = arith.constant 0 : index
    %c0_8 = arith.constant 0 : index
    %22 = vector.load %arg3[%c0_7, %c0_8] : memref<1x32xf32, #tpu.memory_space<vmem>>, vector<1x32xf32>
    %23 = vector.broadcast %22 : vector<1x32xf32> to vector<8x32xf32>
    %24 = arith.addf %21, %23 : vector<8x32xf32>
    %25 = arith.truncf %24 : vector<8x32xf32> to vector<8x32xbf16>
    %c0_9 = arith.constant 0 : index
    %c0_10 = arith.constant 0 : index
    %26 = vector.load %arg4[%c0_9, %c0_10] : memref<32x32xbf16, #tpu.memory_space<vmem>>, vector<32x32xbf16>
    %cst_11 = arith.constant dense<0.000000e+00> : vector<8x32xf32>
    %27 = tpu.matmul %25, %26, %cst_11 {dimension_numbers = #tpu.dot_dimension_numbers<[1], [0], [0], [1], [0, 0, 1, 1], [], []>} : vector<8x32xbf16>, vector<32x32xbf16>, vector<8x32xf32> -> vector<8x32xf32>
    %cst_12 = arith.constant 0.353553385 : f32
    %28 = vector.broadcast %cst_12 : f32 to vector<8x32xf32>
    %29 = arith.mulf %27, %28 : vector<8x32xf32>
    %c0_13 = arith.constant 0 : index
    %c0_14 = arith.constant 0 : index
    %30 = vector.load %arg7[%c0_13, %c0_14] : memref<8x32xf32, #tpu.memory_space<vmem>>, vector<8x32xf32>
    tpu.vector_store %arg7[%c0_13, %c0_14], %29 {strides = array<i32>} : memref<8x32xf32, #tpu.memory_space<vmem>>, vector<8x32xf32>,
    %c0_15 = arith.constant 0 : index
    %c0_16 = arith.constant 0 : index
    %31 = vector.load %arg5[%c0_15, %c0_16] : memref<32x32xbf16, #tpu.memory_space<vmem>>, vector<32x32xbf16>
    %cst_17 = arith.constant dense<0.000000e+00> : vector<8x32xf32>
    %32 = tpu.matmul %25, %31, %cst_17 {dimension_numbers = #tpu.dot_dimension_numbers<[1], [0], [0], [1], [0, 0, 1, 1], [], []>} : vector<8x32xbf16>, vector<32x32xbf16>, vector<8x32xf32> -> vector<8x32xf32>
    %c0_18 = arith.constant 0 : index
    %c0_19 = arith.constant 0 : index
    %33 = vector.load %arg8[%c0_18, %c0_19] : memref<8x32xf32, #tpu.memory_space<vmem>>, vector<8x32xf32>
    tpu.vector_store %arg8[%c0_18, %c0_19], %32 {strides = array<i32>} : memref<8x32xf32, #tpu.memory_space<vmem>>, vector<8x32xf32>,
    %c0_20 = arith.constant 0 : index
    %c0_21 = arith.constant 0 : index
    %34 = vector.load %arg6[%c0_20, %c0_21] : memref<32x32xbf16, #tpu.memory_space<vmem>>, vector<32x32xbf16>
    %cst_22 = arith.constant dense<0.000000e+00> : vector<8x32xf32>
    %35 = tpu.matmul %25, %34, %cst_22 {dimension_numbers = #tpu.dot_dimension_numbers<[1], [0], [0], [1], [0, 0, 1, 1], [], []>} : vector<8x32xbf16>, vector<32x32xbf16>, vector<8x32xf32> -> vector<8x32xf32>
    %c0_23 = arith.constant 0 : index
    %c0_24 = arith.constant 0 : index
    %36 = vector.load %arg9[%c0_23, %c0_24] : memref<8x32xf32, #tpu.memory_space<vmem>>, vector<8x32xf32>
    tpu.vector_store %arg9[%c0_23, %c0_24], %35 {strides = array<i32>} : memref<8x32xf32, #tpu.memory_space<vmem>>, vector<8x32xf32>,
    return
  }
  func.func @transform_0(%arg0: i32) -> (i32, i32) {
    %c0_i32 = arith.constant 0 : i32
    %c0_i32_0 = arith.constant 0 : i32
    return %arg0, %c0_i32 : i32, i32
  }
  func.func @transform_1(%arg0: i32) -> (i32, i32) {
    %c0_i32 = arith.constant 0 : i32
    %c0_i32_0 = arith.constant 0 : i32
    %c0_i32_1 = arith.constant 0 : i32
    return %c0_i32, %c0_i32_0 : i32, i32
  }
  func.func @transform_2(%arg0: i32) -> (i32, i32) {
    %c0_i32 = arith.constant 0 : i32
    %c0_i32_0 = arith.constant 0 : i32
    %c0_i32_1 = arith.constant 0 : i32
    return %c0_i32, %c0_i32_0 : i32, i32
  }
  func.func @transform_3(%arg0: i32) -> (i32, i32) {
    %c0_i32 = arith.constant 0 : i32
    %c0_i32_0 = arith.constant 0 : i32
    %c0_i32_1 = arith.constant 0 : i32
    return %c0_i32, %c0_i32_0 : i32, i32
  }
  func.func @transform_4(%arg0: i32) -> (i32, i32) {
    %c0_i32 = arith.constant 0 : i32
    %c0_i32_0 = arith.constant 0 : i32
    %c0_i32_1 = arith.constant 0 : i32
    return %c0_i32, %c0_i32_0 : i32, i32
  }
  func.func @transform_5(%arg0: i32) -> (i32, i32) {
    %c0_i32 = arith.constant 0 : i32
    %c0_i32_0 = arith.constant 0 : i32
    %c0_i32_1 = arith.constant 0 : i32
    return %c0_i32, %c0_i32_0 : i32, i32
  }
  func.func @transform_6(%arg0: i32) -> (i32, i32) {
    %c0_i32 = arith.constant 0 : i32
    %c0_i32_0 = arith.constant 0 : i32
    return %arg0, %c0_i32 : i32, i32
  }
  func.func @transform_7(%arg0: i32) -> (i32, i32) {
    %c0_i32 = arith.constant 0 : i32
    %c0_i32_0 = arith.constant 0 : i32
    return %arg0, %c0_i32 : i32, i32
  }
  func.func @transform_8(%arg0: i32) -> (i32, i32) {
    %c0_i32 = arith.constant 0 : i32
    %c0_i32_0 = arith.constant 0 : i32
    return %arg0, %c0_i32 : i32, i32
  }
}

</mosaic_0001>

<llo_original>
// kernel: tpu_custom_call.1
$region0: #{tpu_custom_call.1}
  #allocation0 [shape = 'u32[]', space=smem, size = 0x4, offset = 0x4, fixed_abs, tag = 'smem constant byte address 0x4 - core index']
  #allocation1 [shape = 'u32[144,128]{1,0:T(1,128)}', space=vmem, size = 0x12000, scoped, tag = 'internal scratch']
  %s0 = inlined_call_operand.hbm [shape: f32[16,32], index: 0, kind: input, shape index: {}]
  %s1 = inlined_call_operand.hbm [shape: f32[1,32], index: 1, kind: input, shape index: {}]
  %s2 = inlined_call_operand.hbm [shape: f32[1,32], index: 2, kind: input, shape index: {}]
  %s3 = inlined_call_operand.hbm [shape: bf16[32,32], index: 3, kind: input, shape index: {}]
  %s4 = inlined_call_operand.hbm [shape: bf16[32,32], index: 4, kind: input, shape index: {}]
  %s5 = inlined_call_operand.hbm [shape: bf16[32,32], index: 5, kind: input, shape index: {}]
  %s6 = inlined_call_operand.hbm [shape: f32[16,32], index: 6, kind: output, shape index: {0}]
  %s7 = inlined_call_operand.hbm [shape: f32[16,32], index: 7, kind: output, shape index: {1}]
  %s8 = inlined_call_operand.hbm [shape: f32[16,32], index: 8, kind: output, shape index: {2}]
  %9 = xla_tuple %s6, %s7, %s8
  %s10 = sld [smem:[#allocation0]]
  $region97: #{tpu_custom_call.1} parent=0
    _
  %s12 = ssub.s32 1, %s10
  %s13 = scalar_select 0, %s12, %s10
  $region1: #{tpu_custom_call.1} parent=0
    #allocation2 [shape = 'u8[8192]{0}', space=vmem, size = 0x2000, scoped, tag = 'input window, operand 0']
    #allocation3 [shape = 's32[2]{0}', space=sflag, size = 0x8, scoped, tag = 'scoped memory for tpu_custom_call.1']
    #allocation4 [shape = 's32[2]{0}', space=sflag, size = 0x8, scoped, tag = 'scoped memory for tpu_custom_call.1']
    #allocation5 [shape = 'u8[512]{0}', space=vmem, size = 0x400, scoped, tag = 'input window, operand 1, single buffered']
    #allocation6 [shape = 's32[1]{0}', space=sflag, size = 0x4, scoped, tag = 'scoped memory for tpu_custom_call.1']
    #allocation7 [shape = 'u8[512]{0}', space=vmem, size = 0x400, scoped, tag = 'input window, operand 2, single buffered']
    #allocation8 [shape = 'u8[8192]{0}', space=vmem, size = 0x2000, scoped, tag = 'input window, operand 3, single buffered']
    #allocation9 [shape = 's32[1]{0}', space=sflag, size = 0x4, scoped, tag = 'scoped memory for tpu_custom_call.1']
    #allocation10 [shape = 'u8[8192]{0}', space=vmem, size = 0x2000, scoped, tag = 'input window, operand 4, single buffered']
    #allocation11 [shape = 'u8[8192]{0}', space=vmem, size = 0x2000, scoped, tag = 'input window, operand 5, single buffered']
    #allocation12 [shape = 's32[1]{0}', space=sflag, size = 0x4, scoped, tag = 'scoped memory for tpu_custom_call.1']
    #allocation13 [shape = 'u8[8192]{0}', space=vmem, size = 0x2000, scoped, tag = 'output window, operand 0']
    #allocation14 [shape = 'u8[8192]{0}', space=vmem, size = 0x2000, scoped, tag = 'output window, operand 1']
    #allocation15 [shape = 's32[2]{0}', space=sflag, size = 0x8, scoped, tag = 'scoped memory for tpu_custom_call.1']
    #allocation16 [shape = 'u8[8192]{0}', space=vmem, size = 0x2000, scoped, tag = 'output window, operand 2']
    %14 = vsyncpa [#allocation3], 0
    %s15 = scalar_lea.sflag [#allocation3], 1
    %16 = vsyncpa %s15, 0
    %17 = vsyncpa [#allocation6], 0
    %18 = vsyncpa [#allocation9], 0
    %19 = vsyncpa [#allocation12], 0
    %20 = vsyncpa [#allocation4], 0
    %s21 = scalar_lea.sflag [#allocation4], 1
    %22 = vsyncpa %s21, 0
    %23 = vsyncpa [#allocation15], 0
    %s24 = scalar_lea.sflag [#allocation15], 1
    %25 = vsyncpa %s24, 0
    loop: start=0, step=1, limit=4
    $region2: #{tpu_custom_call.1} parent=1 // loop_pre_header
      _
    $region3: #{tpu_custom_call.1} parent=1 // loop_header
      %s27 = sphi 0, %s31
      %p28 = scmp.ge.s32.totalorder %s27, 4
      %s37 = sphi 0, %s39
      %s40 = sphi 0, %s37
      %s41 = sphi 0, %s40
      %s57 = sphi 0, %s41
      %s61 = sphi 0, %s61
      %s63 = sphi 0, %s61
      %s64 = sphi 0, %s63
      %s78 = sphi 0, %s64
      %s82 = sphi 0, %s82
      %s84 = sphi 0, %s82
      %s85 = sphi 0, %s84
      %s99 = sphi 0, %s85
      %s103 = sphi 0, %s103
      %s105 = sphi 0, %s103
      %s106 = sphi 0, %s105
      %s120 = sphi 0, %s106
      %s124 = sphi 0, %s124
      %s126 = sphi 0, %s124
      %s127 = sphi 0, %s126
      %s141 = sphi 0, %s127
      %s145 = sphi 0, %s145
      %s147 = sphi 0, %s145
      %s148 = sphi 0, %s147
      %s162 = sphi 0, %s148
      %s168 = sphi 0, %s170
      %s171 = sphi 0, %s168
      %s172 = sphi 0, %s171
      %s188 = sphi 0, %s172
      %s194 = sphi 0, %s196
      %s197 = sphi 0, %s194
      %s198 = sphi 0, %s197
      %s214 = sphi 0, %s198
      %s220 = sphi 0, %s222
      %s223 = sphi 0, %s220
      %s224 = sphi 0, %s223
      %s240 = sphi 0, %s224
    $region4: #{tpu_custom_call.1} parent=1 // loop_header_branch
      %30 = sbr.rel (%p28) target = $region8
    $region5: #{tpu_custom_call.1} parent=1 // loop_body
      %s32 = ssub.s32 %s27, 1
      %s33 = ssub.s32 %s27, 2
      %s34 = sadd.s32 %s27, 1
      %s35 = ssub.s32 %s27, %s34
      %p36 = scmp.eq.s32.totalorder %s35, 0
      %s38 = sadd.s32 %s37, 1
      %s39 = scalar_select %p36, %s37, %s38
      %p42 = pneg %p36
      %p43 = scmp.eq.s32.totalorder %s27, 1
      %p44 = por %p42, %p43
      %p45 = scmp.ne.s32.totalorder %s37, %s40
      %p46 = scmp.eq.s32.totalorder %s27, 0
      %p47 = por %p45, %p46
      %p48 = scmp.ne.s32.totalorder %s37, %s40
      %p49 = scmp.eq.s32.totalorder %s32, 1
      %p50 = por %p48, %p49
      %p51 = scmp.ne.s32.totalorder %s40, %s41
      %p52 = scmp.eq.s32.totalorder %s32, 0
      %p53 = por %p51, %p52
      %p54 = scmp.ne.s32.totalorder %s40, %s41
      %p55 = scmp.eq.s32.totalorder %s33, 1
      %p56 = por %p54, %p55
      %p58 = scmp.ne.s32.totalorder %s41, %s57
      %p59 = scmp.eq.s32.totalorder %s33, 0
      %p60 = por %p58, %p59
      %s62 = sadd.s32 %s61, 1
      %p65 = scmp.eq.s32.totalorder %s27, 1
      %p66 = scmp.ne.s32.totalorder %s61, %s63
      %p67 = scmp.eq.s32.totalorder %s27, 0
      %p68 = por %p66, %p67
      %p69 = scmp.ne.s32.totalorder %s61, %s63
      %p70 = scmp.eq.s32.totalorder %s32, 1
      %p71 = por %p69, %p70
      %p72 = scmp.ne.s32.totalorder %s63, %s64
      %p73 = scmp.eq.s32.totalorder %s32, 0
      %p74 = por %p72, %p73
      %p75 = scmp.ne.s32.totalorder %s63, %s64
      %p76 = scmp.eq.s32.totalorder %s33, 1
      %p77 = por %p75, %p76
      %p79 = scmp.ne.s32.totalorder %s64, %s78
      %p80 = scmp.eq.s32.totalorder %s33, 0
      %p81 = por %p79, %p80
      %s83 = sadd.s32 %s82, 1
      %p86 = scmp.eq.s32.totalorder %s27, 1
      %p87 = scmp.ne.s32.totalorder %s82, %s84
      %p88 = scmp.eq.s32.totalorder %s27, 0
      %p89 = por %p87, %p88
      %p90 = scmp.ne.s32.totalorder %s82, %s84
      %p91 = scmp.eq.s32.totalorder %s32, 1
      %p92 = por %p90, %p91
      %p93 = scmp.ne.s32.totalorder %s84, %s85
      %p94 = scmp.eq.s32.totalorder %s32, 0
      %p95 = por %p93, %p94
      %p96 = scmp.ne.s32.totalorder %s84, %s85
      %p97 = scmp.eq.s32.totalorder %s33, 1
      %p98 = por %p96, %p97
      %p100 = scmp.ne.s32.totalorder %s85, %s99
      %p101 = scmp.eq.s32.totalorder %s33, 0
      %p102 = por %p100, %p101
      %s104 = sadd.s32 %s103, 1
      %p107 = scmp.eq.s32.totalorder %s27, 1
      %p108 = scmp.ne.s32.totalorder %s103, %s105
      %p109 = scmp.eq.s32.totalorder %s27, 0
      %p110 = por %p108, %p109
      %p111 = scmp.ne.s32.totalorder %s103, %s105
      %p112 = scmp.eq.s32.totalorder %s32, 1
      %p113 = por %p111, %p112
      %p114 = scmp.ne.s32.totalorder %s105, %s106
      %p115 = scmp.eq.s32.totalorder %s32, 0
      %p116 = por %p114, %p115
      %p117 = scmp.ne.s32.totalorder %s105, %s106
      %p118 = scmp.eq.s32.totalorder %s33, 1
      %p119 = por %p117, %p118
      %p121 = scmp.ne.s32.totalorder %s106, %s120
      %p122 = scmp.eq.s32.totalorder %s33, 0
      %p123 = por %p121, %p122
      %s125 = sadd.s32 %s124, 1
      %p128 = scmp.eq.s32.totalorder %s27, 1
      %p129 = scmp.ne.s32.totalorder %s124, %s126
      %p130 = scmp.eq.s32.totalorder %s27, 0
      %p131 = por %p129, %p130
      %p132 = scmp.ne.s32.totalorder %s124, %s126
      %p133 = scmp.eq.s32.totalorder %s32, 1
      %p134 = por %p132, %p133
      %p135 = scmp.ne.s32.totalorder %s126, %s127
      %p136 = scmp.eq.s32.totalorder %s32, 0
      %p137 = por %p135, %p136
      %p138 = scmp.ne.s32.totalorder %s126, %s127
      %p139 = scmp.eq.s32.totalorder %s33, 1
      %p140 = por %p138, %p139
      %p142 = scmp.ne.s32.totalorder %s127, %s141
      %p143 = scmp.eq.s32.totalorder %s33, 0
      %p144 = por %p142, %p143
      %s146 = sadd.s32 %s145, 1
      %p149 = scmp.eq.s32.totalorder %s27, 1
      %p150 = scmp.ne.s32.totalorder %s145, %s147
      %p151 = scmp.eq.s32.totalorder %s27, 0
      %p152 = por %p150, %p151
      %p153 = scmp.ne.s32.totalorder %s145, %s147
      %p154 = scmp.eq.s32.totalorder %s32, 1
      %p155 = por %p153, %p154
      %p156 = scmp.ne.s32.totalorder %s147, %s148
      %p157 = scmp.eq.s32.totalorder %s32, 0
      %p158 = por %p156, %p157
      %p159 = scmp.ne.s32.totalorder %s147, %s148
      %p160 = scmp.eq.s32.totalorder %s33, 1
      %p161 = por %p159, %p160
      %p163 = scmp.ne.s32.totalorder %s148, %s162
      %p164 = scmp.eq.s32.totalorder %s33, 0
      %p165 = por %p163, %p164
      %s166 = ssub.s32 %s27, %s34
      %p167 = scmp.eq.s32.totalorder %s166, 0
      %s169 = sadd.s32 %s168, 1
      %s170 = scalar_select %p167, %s168, %s169
      %p173 = pneg %p167
      %p174 = scmp.eq.s32.totalorder %s27, 1
      %p175 = por %p173, %p174
      %p176 = scmp.ne.s32.totalorder %s168, %s171
      %p177 = scmp.eq.s32.totalorder %s27, 0
      %p178 = por %p176, %p177
      %p179 = scmp.ne.s32.totalorder %s168, %s171
      %p180 = scmp.eq.s32.totalorder %s32, 1
      %p181 = por %p179, %p180
      %p182 = scmp.ne.s32.totalorder %s171, %s172
      %p183 = scmp.eq.s32.totalorder %s32, 0
      %p184 = por %p182, %p183
      %p185 = scmp.ne.s32.totalorder %s171, %s172
      %p186 = scmp.eq.s32.totalorder %s33, 1
      %p187 = por %p185, %p186
      %p189 = scmp.ne.s32.totalorder %s172, %s188
      %p190 = scmp.eq.s32.totalorder %s33, 0
      %p191 = por %p189, %p190
      %s192 = ssub.s32 %s27, %s34
      %p193 = scmp.eq.s32.totalorder %s192, 0
      %s195 = sadd.s32 %s194, 1
      %s196 = scalar_select %p193, %s194, %s195
      %p199 = pneg %p193
      %p200 = scmp.eq.s32.totalorder %s27, 1
      %p201 = por %p199, %p200
      %p202 = scmp.ne.s32.totalorder %s194, %s197
      %p203 = scmp.eq.s32.totalorder %s27, 0
      %p204 = por %p202, %p203
      %p205 = scmp.ne.s32.totalorder %s194, %s197
      %p206 = scmp.eq.s32.totalorder %s32, 1
      %p207 = por %p205, %p206
      %p208 = scmp.ne.s32.totalorder %s197, %s198
      %p209 = scmp.eq.s32.totalorder %s32, 0
      %p210 = por %p208, %p209
      %p211 = scmp.ne.s32.totalorder %s197, %s198
      %p212 = scmp.eq.s32.totalorder %s33, 1
      %p213 = por %p211, %p212
      %p215 = scmp.ne.s32.totalorder %s198, %s214
      %p216 = scmp.eq.s32.totalorder %s33, 0
      %p217 = por %p215, %p216
      %s218 = ssub.s32 %s27, %s34
      %p219 = scmp.eq.s32.totalorder %s218, 0
      %s221 = sadd.s32 %s220, 1
      %s222 = scalar_select %p219, %s220, %s221
      %p225 = pneg %p219
      %p226 = scmp.eq.s32.totalorder %s27, 1
      %p227 = por %p225, %p226
      %p228 = scmp.ne.s32.totalorder %s220, %s223
      %p229 = scmp.eq.s32.totalorder %s27, 0
      %p230 = por %p228, %p229
      %p231 = scmp.ne.s32.totalorder %s220, %s223
      %p232 = scmp.eq.s32.totalorder %s32, 1
      %p233 = por %p231, %p232
      %p234 = scmp.ne.s32.totalorder %s223, %s224
      %p235 = scmp.eq.s32.totalorder %s32, 0
      %p236 = por %p234, %p235
      %p237 = scmp.ne.s32.totalorder %s223, %s224
      %p238 = scmp.eq.s32.totalorder %s33, 1
      %p239 = por %p237, %p238
      %p241 = scmp.ne.s32.totalorder %s224, %s240
      %p242 = scmp.eq.s32.totalorder %s33, 0
      %p243 = por %p241, %p242
      %p244 = scmp.le.s32.totalorder 1, %s27
      %p245 = scmp.lt.s32.totalorder %s27, 3
      %p246 = pnand %p244, %p245
      %p247 = pneg %p246
      // Predicated region
      $region9: #{tpu_custom_call.1} parent=5 // pred_check
        _
      $region10: #{tpu_custom_call.1} parent=5 // pred_check_branch
        %249 = sbr.rel (%p246) target = $region12
      $region11: #{tpu_custom_call.1} parent=5 // pred_region
        %s250 = ssub.s32 %s27, 1
        // Predicated region
        $region13: #{tpu_custom_call.1} parent=11 // pred_check
          %p251 = pneg %p74
        $region14: #{tpu_custom_call.1} parent=11 // pred_check_branch
          %253 = sbr.rel (%p251) target = $region16
        $region15: #{tpu_custom_call.1} parent=11 // pred_region
          %s255 = ssub.s32 16, 16
          %256 = vsyncadd [#allocation6], %s255
          %s258 = sshll.u32 [#allocation5], 4
          %s259 = int_to_ptr.vmem [resolvable:$true] %s258
          %261 = dma.hbm_to_vmem [thread:$0]  %s1, 16, %s259, [#allocation6]
        $region16: #{tpu_custom_call.1} parent=11 // pred_fallthru
          _
        // Predicated region
        $region17: #{tpu_custom_call.1} parent=11 // pred_check
          %p262 = pneg %p95
        $region18: #{tpu_custom_call.1} parent=11 // pred_check_branch
          %264 = sbr.rel (%p262) target = $region20
        $region19: #{tpu_custom_call.1} parent=11 // pred_region
          %s266 = ssub.s32 16, 16
          %267 = vsyncadd [#allocation6], %s266
          %s269 = sshll.u32 [#allocation7], 4
          %s270 = int_to_ptr.vmem [resolvable:$true] %s269
          %272 = dma.hbm_to_vmem [thread:$0]  %s2, 16, %s270, [#allocation6]
        $region20: #{tpu_custom_call.1} parent=11 // pred_fallthru
          _
        // Predicated region
        $region21: #{tpu_custom_call.1} parent=11 // pred_check
          %p273 = pneg %p116
        $region22: #{tpu_custom_call.1} parent=11 // pred_check_branch
          %275 = sbr.rel (%p273) target = $region24
        $region23: #{tpu_custom_call.1} parent=11 // pred_region
          %s277 = ssub.s32 256, 256
          %278 = vsyncadd [#allocation9], %s277
          %s279 = sshll.u32 [#allocation8], 4
          %s280 = int_to_ptr.vmem [resolvable:$true] %s279
          %285 = dma.hbm_to_vmem [thread:$0]  %s3, 256, %s280, [#allocation9], 64, 64, 4
        $region24: #{tpu_custom_call.1} parent=11 // pred_fallthru
          _
        // Predicated region
        $region25: #{tpu_custom_call.1} parent=11 // pred_check
          %p286 = pneg %p137
        $region26: #{tpu_custom_call.1} parent=11 // pred_check_branch
          %288 = sbr.rel (%p286) target = $region28
        $region27: #{tpu_custom_call.1} parent=11 // pred_region
          %s290 = ssub.s32 256, 256
          %291 = vsyncadd [#allocation9], %s290
          %s292 = sshll.u32 [#allocation10], 4
          %s293 = int_to_ptr.vmem [resolvable:$true] %s292
          %298 = dma.hbm_to_vmem [thread:$0]  %s4, 256, %s293, [#allocation9], 64, 64, 4
        $region28: #{tpu_custom_call.1} parent=11 // pred_fallthru
          _
        // Predicated region
        $region29: #{tpu_custom_call.1} parent=11 // pred_check
          %p299 = pneg %p158
        $region30: #{tpu_custom_call.1} parent=11 // pred_check_branch
          %301 = sbr.rel (%p299) target = $region32
        $region31: #{tpu_custom_call.1} parent=11 // pred_region
          %s303 = ssub.s32 256, 256
          %304 = vsyncadd [#allocation12], %s303
          %s305 = sshll.u32 [#allocation11], 4
          %s306 = int_to_ptr.vmem [resolvable:$true] %s305
          %311 = dma.hbm_to_vmem [thread:$0]  %s5, 256, %s306, [#allocation12], 64, 64, 4
        $region32: #{tpu_custom_call.1} parent=11 // pred_fallthru
          _
      $region12: #{tpu_custom_call.1} parent=5 // pred_fallthru
        _
      %p312 = scmp.lt.s32.totalorder %s27, 2
      // Predicated region
      $region33: #{tpu_custom_call.1} parent=5 // pred_check
        %p313 = pneg %p312
      $region34: #{tpu_custom_call.1} parent=5 // pred_check_branch
        %315 = sbr.rel (%p313) target = $region36
      $region35: #{tpu_custom_call.1} parent=5 // pred_region
        // Predicated region
        $region37: #{tpu_custom_call.1} parent=35 // pred_check
          %p316 = pneg %p47
        $region38: #{tpu_custom_call.1} parent=35 // pred_check_branch
          %318 = sbr.rel (%p316) target = $region40
        $region39: #{tpu_custom_call.1} parent=35 // pred_region
          %s319 = sand.u32 %s37, 1
          %s320 = scalar_lea.sflag [#allocation3], %s319
          %s321 = sand.u32 %s37, 1
          %s322 = smul.addr %s321, 8
          %s323 = scalar_lea.vmem [#allocation2], %s322
          %s325 = ssub.s32 128, 128
          %326 = vsyncadd %s320, %s325
          %s327 = smul.addr %s27, 128
          %s328 = scalar_lea.hbm %s0, %s327
          %s330 = sshll.u32 %s323, 4
          %s331 = int_to_ptr.vmem [resolvable:$true] %s330
          %333 = dma.hbm_to_vmem [thread:$0]  %s328, 128, %s331, %s320
        $region40: #{tpu_custom_call.1} parent=35 // pred_fallthru
          _
      $region36: #{tpu_custom_call.1} parent=5 // pred_fallthru
        _
      %p334 = scmp.le.s32.totalorder 1, %s27
      %p335 = scmp.lt.s32.totalorder %s27, 3
      %p336 = pnand %p334, %p335
      %p337 = pneg %p336
      // Predicated region
      $region41: #{tpu_custom_call.1} parent=5 // pred_check
        _
      $region42: #{tpu_custom_call.1} parent=5 // pred_check_branch
        %339 = sbr.rel (%p336) target = $region44
      $region43: #{tpu_custom_call.1} parent=5 // pred_region
        %s340 = ssub.s32 %s27, 1
        %s341 = sand.u32 %s40, 1
        %s342 = scalar_lea.sflag [#allocation3], %s341
        %s343 = sand.u32 %s40, 1
        %s344 = smul.addr %s343, 8
        %s345 = scalar_lea.vmem [#allocation2], %s344
        // Predicated region
        $region45: #{tpu_custom_call.1} parent=43 // pred_check
          %p346 = pneg %p53
        $region46: #{tpu_custom_call.1} parent=43 // pred_check_branch
          %348 = sbr.rel (%p346) target = $region48
        $region47: #{tpu_custom_call.1} parent=43 // pred_region
          %349 = dma.done %s342, 128
        $region48: #{tpu_custom_call.1} parent=43 // pred_fallthru
          _
        // Predicated region
        $region49: #{tpu_custom_call.1} parent=43 // pred_check
          %p350 = pneg %p74
        $region50: #{tpu_custom_call.1} parent=43 // pred_check_branch
          %352 = sbr.rel (%p350) target = $region52
        $region51: #{tpu_custom_call.1} parent=43 // pred_region
          %353 = dma.done [#allocation6], 16
        $region52: #{tpu_custom_call.1} parent=43 // pred_fallthru
          _
        // Predicated region
        $region53: #{tpu_custom_call.1} parent=43 // pred_check
          %p354 = pneg %p95
        $region54: #{tpu_custom_call.1} parent=43 // pred_check_branch
          %356 = sbr.rel (%p354) target = $region56
        $region55: #{tpu_custom_call.1} parent=43 // pred_region
          %357 = dma.done [#allocation6], 16
        $region56: #{tpu_custom_call.1} parent=43 // pred_fallthru
          _
        // Predicated region
        $region57: #{tpu_custom_call.1} parent=43 // pred_check
          %p358 = pneg %p116
        $region58: #{tpu_custom_call.1} parent=43 // pred_check_branch
          %360 = sbr.rel (%p358) target = $region60
        $region59: #{tpu_custom_call.1} parent=43 // pred_region
          %361 = dma.done [#allocation9], 256
        $region60: #{tpu_custom_call.1} parent=43 // pred_fallthru
          _
        // Predicated region
        $region61: #{tpu_custom_call.1} parent=43 // pred_check
          %p362 = pneg %p137
        $region62: #{tpu_custom_call.1} parent=43 // pred_check_branch
          %364 = sbr.rel (%p362) target = $region64
        $region63: #{tpu_custom_call.1} parent=43 // pred_region
          %365 = dma.done [#allocation9], 256
        $region64: #{tpu_custom_call.1} parent=43 // pred_fallthru
          _
        // Predicated region
        $region65: #{tpu_custom_call.1} parent=43 // pred_check
          %p366 = pneg %p158
        $region66: #{tpu_custom_call.1} parent=43 // pred_check_branch
          %368 = sbr.rel (%p366) target = $region68
        $region67: #{tpu_custom_call.1} parent=43 // pred_region
          %369 = dma.done [#allocation12], 256
        $region68: #{tpu_custom_call.1} parent=43 // pred_fallthru
          _
        %s370 = sand.u32 %s40, 1
        %s371 = scalar_lea.sflag [#allocation3], %s370
        %s372 = sand.u32 %s40, 1
        %s373 = smul.addr %s372, 8
        %s374 = scalar_lea.vmem [#allocation2], %s373
        %p375 = pneg %p53
        %p376 = pneg %p50
        %p377 = pneg %p74
        %p378 = pneg %p71
        %p379 = pneg %p95
        %p380 = pneg %p92
        %p381 = pneg %p116
        %p382 = pneg %p113
        %p383 = pneg %p137
        %p384 = pneg %p134
        %p385 = pneg %p158
        %p386 = pneg %p155
        %p387 = pneg %p184
        %p388 = pneg %p181
        %s389 = sand.u32 %s171, 1
        %s390 = scalar_lea.sflag [#allocation4], %s389
        %s391 = sand.u32 %s171, 1
        %s392 = smul.addr %s391, 8
        %s393 = scalar_lea.vmem [#allocation13], %s392
        %p394 = pneg %p210
        %p395 = pneg %p207
        %s396 = sand.u32 %s32, 1
        %s397 = scalar_lea.sflag [#allocation15], %s396
        %s398 = sand.u32 %s197, 1
        %s399 = smul.addr %s398, 8
        %s400 = scalar_lea.vmem [#allocation14], %s399
        %p401 = pneg %p236
        %p402 = pneg %p233
        %s403 = sand.u32 %s32, 1
        %s404 = scalar_lea.sflag [#allocation15], %s403
        %s405 = sand.u32 %s223, 1
        %s406 = smul.addr %s405, 8
        %s407 = scalar_lea.vmem [#allocation16], %s406
        %v409 = vld [vmem:[%s345] sm:$0xff]
        %vm410 = vcmask 261120
        %v411 = vsel %vm410, %v409, 0.0
        %412 = vadd.xlane.f32.xlu0 %v411
        %v413 = vpop.xlane.xlu0 %412
        %v414 = vrcp.pop 32.0
        %v415 = vmul.f32 %v413, %v414
        %v416 = vsub.f32 %v409, %v415
        %v417 = vmul.f32 %v416, %v416
        %v418 = vsel %vm410, %v417, 0.0
        %419 = vadd.xlane.f32.xlu0 %v418
        %v420 = vpop.xlane.xlu0 %419
        %v421 = vmul.f32 %v420, %v414
        %v422 = vadd.f32 %v421, 1e-05
        %v423 = vrsqrt.pop %v422
        %v424 = vmul.f32 %v416, %v423
        %v425 = vld [vmem:[#allocation5] sm:$0x1]
        %v427 = vlaneseq
        %v428 = vshrl.u32 %v427, 7
        %v429 = vsub.s32 0, %v428
        %v430 = vrot.slane %v425, %v429
        %v432 = vmul.f32 %v424, %v430
        %v433 = vld [vmem:[#allocation7] sm:$0x1]
        %v435 = vlaneseq
        %v436 = vshrl.u32 %v435, 7
        %v437 = vsub.s32 0, %v436
        %v438 = vrot.slane %v433, %v437
        %v440 = vadd.f32 %v432, %v438
        %v441 = vpack.c.bf16 %v440, %v440
        %v442 = vld [vmem:[#allocation8] sm:$0xf]
        %v443 = vld [vmem:[#allocation8 + $0x4] sm:$0xf]
        %v444 = vld [vmem:[#allocation8 + $0x8] sm:$0xf]
        %v445 = vld [vmem:[#allocation8 + $0xc] sm:$0xf]
        %v450 = vunpack.c.l.b16 %v442
        %v451 = vunpack.c.l.b16 %v443
        %v452 = vunpack.c.l.b16 %v444
        %v453 = vunpack.c.l.b16 %v445
        %v454 = vpack.c.b16 %v451, %v450
        %v455 = vpack.c.b16 %v453, %v452
        %v459 = vsel %vm410, %v441, 0
        %461 = vmatprep.subr.bf16.mxu0 0
        %462 = vmatpush1.bf16.msra.mxu0 %v454
        %463 = vmatprep.subr.bf16.mxu0 0
        %464 = vmatpush1.bf16.msra.mxu0 %v455
        %465 = vmatprep.subr.bf16.mxu0 0
        %466 = vmatpush1.bf16.msra.mxu0 0
        %467 = vmatprep.subr.bf16.mxu0 0
        %468 = vmatpush1.bf16.msra.mxu0 0
        %469 = vmatprep.subr.bf16.mxu0 0
        %470 = vmatpush1.bf16.msra.mxu0 0
        %471 = vmatprep.subr.bf16.mxu0 0
        %472 = vmatpush1.bf16.msra.mxu0 0
        %473 = vmatprep.subr.bf16.mxu0 0
        %474 = vmatpush1.bf16.msra.mxu0 0
        %475 = vmatprep.subr.bf16.mxu0 0
        %476 = vmatpush1.bf16.msra.mxu0 0
        %477 = vmatprep.subr.bf16.mxu0 0
        %478 = vmatpush1.bf16.msra.mxu0 0
        %479 = vmatprep.subr.bf16.mxu0 0
        %480 = vmatpush1.bf16.msra.mxu0 0
        %481 = vmatprep.subr.bf16.mxu0 0
        %482 = vmatpush1.bf16.msra.mxu0 0
        %483 = vmatprep.subr.bf16.mxu0 0
        %484 = vmatpush1.bf16.msra.mxu0 0
        %485 = vmatprep.subr.bf16.mxu0 0
        %486 = vmatpush1.bf16.msra.mxu0 0
        %487 = vmatprep.subr.bf16.mxu0 0
        %488 = vmatpush1.bf16.msra.mxu0 0
        %489 = vmatprep.subr.bf16.mxu0 0
        %490 = vmatpush1.bf16.msra.mxu0 0
        %491 = vmatprep.subr.bf16.mxu0 0
        %492 = vmatpush1.bf16.msra.mxu0 0
        %493 = vmatprep.mubr.bf16.mxu0 0
        %494 = vmatmul.mubr.bf16.gmra.mrb[0].mxu0 %v459
        %v495 = vpop.f32.mrb[0].mxu0
        %v496 = vadd.f32 0.0, %v495
        %v497 = vpop.f32.mrb[0].mxu0
        %v498 = vpop.f32.mrb[0].mxu0
        %v499 = vpop.f32.mrb[0].mxu0
        %500 = vdwg.mxu0
        %v501 = vmul.f32 %v496, 0.35355338
        %502 = vst.msk [vmem:[%s393] sm:$0xff] %vm410, %v501
        %v503 = vld [vmem:[#allocation10] sm:$0xf]
        %v504 = vld [vmem:[#allocation10 + $0x4] sm:$0xf]
        %v505 = vld [vmem:[#allocation10 + $0x8] sm:$0xf]
        %v506 = vld [vmem:[#allocation10 + $0xc] sm:$0xf]
        %v511 = vunpack.c.l.b16 %v503
        %v512 = vunpack.c.l.b16 %v504
        %v513 = vunpack.c.l.b16 %v505
        %v514 = vunpack.c.l.b16 %v506
        %v515 = vpack.c.b16 %v512, %v511
        %v516 = vpack.c.b16 %v514, %v513
        %519 = vmatprep.subr.bf16.mxu0 0
        %520 = vmatpush1.bf16.msra.mxu0 %v515
        %521 = vmatprep.subr.bf16.mxu0 0
        %522 = vmatpush1.bf16.msra.mxu0 %v516
        %523 = vmatprep.subr.bf16.mxu0 0
        %524 = vmatpush1.bf16.msra.mxu0 0
        %525 = vmatprep.subr.bf16.mxu0 0
        %526 = vmatpush1.bf16.msra.mxu0 0
        %527 = vmatprep.subr.bf16.mxu0 0
        %528 = vmatpush1.bf16.msra.mxu0 0
        %529 = vmatprep.subr.bf16.mxu0 0
        %530 = vmatpush1.bf16.msra.mxu0 0
        %531 = vmatprep.subr.bf16.mxu0 0
        %532 = vmatpush1.bf16.msra.mxu0 0
        %533 = vmatprep.subr.bf16.mxu0 0
        %534 = vmatpush1.bf16.msra.mxu0 0
        %535 = vmatprep.subr.bf16.mxu0 0
        %536 = vmatpush1.bf16.msra.mxu0 0
        %537 = vmatprep.subr.bf16.mxu0 0
        %538 = vmatpush1.bf16.msra.mxu0 0
        %539 = vmatprep.subr.bf16.mxu0 0
        %540 = vmatpush1.bf16.msra.mxu0 0
        %541 = vmatprep.subr.bf16.mxu0 0
        %542 = vmatpush1.bf16.msra.mxu0 0
        %543 = vmatprep.subr.bf16.mxu0 0
        %544 = vmatpush1.bf16.msra.mxu0 0
        %545 = vmatprep.subr.bf16.mxu0 0
        %546 = vmatpush1.bf16.msra.mxu0 0
        %547 = vmatprep.subr.bf16.mxu0 0
        %548 = vmatpush1.bf16.msra.mxu0 0
        %549 = vmatprep.subr.bf16.mxu0 0
        %550 = vmatpush1.bf16.msra.mxu0 0
        %551 = vmatprep.mubr.bf16.mxu0 0
        %552 = vmatmul.mubr.bf16.gmra.mrb[0].mxu0 %v459
        %v553 = vpop.f32.mrb[0].mxu0
        %v554 = vadd.f32 0.0, %v553
        %v555 = vpop.f32.mrb[0].mxu0
        %v556 = vpop.f32.mrb[0].mxu0
        %v557 = vpop.f32.mrb[0].mxu0
        %558 = vdwg.mxu0
        %559 = vst.msk [vmem:[%s400] sm:$0xff] %vm410, %v554
        %v560 = vld [vmem:[#allocation11] sm:$0xf]
        %v561 = vld [vmem:[#allocation11 + $0x4] sm:$0xf]
        %v562 = vld [vmem:[#allocation11 + $0x8] sm:$0xf]
        %v563 = vld [vmem:[#allocation11 + $0xc] sm:$0xf]
        %v568 = vunpack.c.l.b16 %v560
        %v569 = vunpack.c.l.b16 %v561
        %v570 = vunpack.c.l.b16 %v562
        %v571 = vunpack.c.l.b16 %v563
        %v572 = vpack.c.b16 %v569, %v568
        %v573 = vpack.c.b16 %v571, %v570
        %576 = vmatprep.subr.bf16.mxu0 0
        %577 = vmatpush1.bf16.msra.mxu0 %v572
        %578 = vmatprep.subr.bf16.mxu0 0
        %579 = vmatpush1.bf16.msra.mxu0 %v573
        %580 = vmatprep.subr.bf16.mxu0 0
        %581 = vmatpush1.bf16.msra.mxu0 0
        %582 = vmatprep.subr.bf16.mxu0 0
        %583 = vmatpush1.bf16.msra.mxu0 0
        %584 = vmatprep.subr.bf16.mxu0 0
        %585 = vmatpush1.bf16.msra.mxu0 0
        %586 = vmatprep.subr.bf16.mxu0 0
        %587 = vmatpush1.bf16.msra.mxu0 0
        %588 = vmatprep.subr.bf16.mxu0 0
        %589 = vmatpush1.bf16.msra.mxu0 0
        %590 = vmatprep.subr.bf16.mxu0 0
        %591 = vmatpush1.bf16.msra.mxu0 0
        %592 = vmatprep.subr.bf16.mxu0 0
        %593 = vmatpush1.bf16.msra.mxu0 0
        %594 = vmatprep.subr.bf16.mxu0 0
        %595 = vmatpush1.bf16.msra.mxu0 0
        %596 = vmatprep.subr.bf16.mxu0 0
        %597 = vmatpush1.bf16.msra.mxu0 0
        %598 = vmatprep.subr.bf16.mxu0 0
        %599 = vmatpush1.bf16.msra.mxu0 0
        %600 = vmatprep.subr.bf16.mxu0 0
        %601 = vmatpush1.bf16.msra.mxu0 0
        %602 = vmatprep.subr.bf16.mxu0 0
        %603 = vmatpush1.bf16.msra.mxu0 0
        %604 = vmatprep.subr.bf16.mxu0 0
        %605 = vmatpush1.bf16.msra.mxu0 0
        %606 = vmatprep.subr.bf16.mxu0 0
        %607 = vmatpush1.bf16.msra.mxu0 0
        %608 = vmatprep.mubr.bf16.mxu0 0
        %609 = vmatmul.mubr.bf16.gmra.mrb[0].mxu0 %v459
        %v610 = vpop.f32.mrb[0].mxu0
        %v611 = vadd.f32 0.0, %v610
        %v612 = vpop.f32.mrb[0].mxu0
        %v613 = vpop.f32.mrb[0].mxu0
        %v614 = vpop.f32.mrb[0].mxu0
        %615 = vdwg.mxu0
        %616 = vst.msk [vmem:[%s407] sm:$0xff] %vm410, %v611
        %s617 = sand.u32 %s171, 1
        %s618 = scalar_lea.sflag [#allocation4], %s617
        %s619 = sand.u32 %s171, 1
        %s620 = smul.addr %s619, 8
        %s621 = scalar_lea.vmem [#allocation13], %s620
        %s622 = sand.u32 %s32, 1
        %s623 = scalar_lea.sflag [#allocation15], %s622
        %s624 = sand.u32 %s197, 1
        %s625 = smul.addr %s624, 8
        %s626 = scalar_lea.vmem [#allocation14], %s625
        %s627 = sand.u32 %s32, 1
        %s628 = scalar_lea.sflag [#allocation15], %s627
        %s629 = sand.u32 %s223, 1
        %s630 = smul.addr %s629, 8
        %s631 = scalar_lea.vmem [#allocation16], %s630
        // Predicated region
        $region69: #{tpu_custom_call.1} parent=43 // pred_check
          %p632 = pneg %p181
        $region70: #{tpu_custom_call.1} parent=43 // pred_check_branch
          %634 = sbr.rel (%p632) target = $region72
        $region71: #{tpu_custom_call.1} parent=43 // pred_region
          %s636 = ssub.s32 128, 128
          %637 = vsyncadd %s618, %s636
          %s638 = smul.addr %s32, 128
          %s639 = scalar_lea.hbm %s6, %s638
          %s641 = sshll.u32 %s621, 4
          %s642 = int_to_ptr.vmem [resolvable:$true] %s641
          %644 = dma.vmem_to_hbm [thread:$0]  %s642, 128, %s639, %s618
        $region72: #{tpu_custom_call.1} parent=43 // pred_fallthru
          _
        // Predicated region
        $region73: #{tpu_custom_call.1} parent=43 // pred_check
          %p645 = pneg %p207
        $region74: #{tpu_custom_call.1} parent=43 // pred_check_branch
          %647 = sbr.rel (%p645) target = $region76
        $region75: #{tpu_custom_call.1} parent=43 // pred_region
          %s649 = ssub.s32 128, 128
          %650 = vsyncadd %s623, %s649
          %s651 = smul.addr %s32, 128
          %s652 = scalar_lea.hbm %s7, %s651
          %s654 = sshll.u32 %s626, 4
          %s655 = int_to_ptr.vmem [resolvable:$true] %s654
          %657 = dma.vmem_to_hbm [thread:$0]  %s655, 128, %s652, %s623
        $region76: #{tpu_custom_call.1} parent=43 // pred_fallthru
          _
        // Predicated region
        $region77: #{tpu_custom_call.1} parent=43 // pred_check
          %p658 = pneg %p233
        $region78: #{tpu_custom_call.1} parent=43 // pred_check_branch
          %660 = sbr.rel (%p658) target = $region80
        $region79: #{tpu_custom_call.1} parent=43 // pred_region
          %s662 = ssub.s32 128, 128
          %663 = vsyncadd %s628, %s662
          %s664 = smul.addr %s32, 128
          %s665 = scalar_lea.hbm %s8, %s664
          %s667 = sshll.u32 %s631, 4
          %s668 = int_to_ptr.vmem [resolvable:$true] %s667
          %670 = dma.vmem_to_hbm [thread:$0]  %s668, 128, %s665, %s628
        $region80: #{tpu_custom_call.1} parent=43 // pred_fallthru
          _
      $region44: #{tpu_custom_call.1} parent=5 // pred_fallthru
        _
      %p671 = scmp.le.s32.totalorder 2, %s27
      // Predicated region
      $region81: #{tpu_custom_call.1} parent=5 // pred_check
        %p672 = pneg %p671
      $region82: #{tpu_custom_call.1} parent=5 // pred_check_branch
        %674 = sbr.rel (%p672) target = $region84
      $region83: #{tpu_custom_call.1} parent=5 // pred_region
        %s675 = ssub.s32 %s27, 2
        // Predicated region
        $region85: #{tpu_custom_call.1} parent=83 // pred_check
          %p676 = pneg %p187
        $region86: #{tpu_custom_call.1} parent=83 // pred_check_branch
          %678 = sbr.rel (%p676) target = $region88
        $region87: #{tpu_custom_call.1} parent=83 // pred_region
          %s679 = sand.u32 %s172, 1
          %s680 = scalar_lea.sflag [#allocation4], %s679
          %s681 = sand.u32 %s172, 1
          %s682 = smul.addr %s681, 8
          %s683 = scalar_lea.vmem [#allocation13], %s682
          %684 = dma.done %s680, 128
        $region88: #{tpu_custom_call.1} parent=83 // pred_fallthru
          _
        // Predicated region
        $region89: #{tpu_custom_call.1} parent=83 // pred_check
          %p685 = pneg %p213
        $region90: #{tpu_custom_call.1} parent=83 // pred_check_branch
          %687 = sbr.rel (%p685) target = $region92
        $region91: #{tpu_custom_call.1} parent=83 // pred_region
          %s688 = sand.u32 %s33, 1
          %s689 = scalar_lea.sflag [#allocation15], %s688
          %s690 = sand.u32 %s198, 1
          %s691 = smul.addr %s690, 8
          %s692 = scalar_lea.vmem [#allocation14], %s691
          %693 = dma.done %s689, 128
        $region92: #{tpu_custom_call.1} parent=83 // pred_fallthru
          _
        // Predicated region
        $region93: #{tpu_custom_call.1} parent=83 // pred_check
          %p694 = pneg %p239
        $region94: #{tpu_custom_call.1} parent=83 // pred_check_branch
          %696 = sbr.rel (%p694) target = $region96
        $region95: #{tpu_custom_call.1} parent=83 // pred_region
          %s697 = sand.u32 %s33, 1
          %s698 = scalar_lea.sflag [#allocation15], %s697
          %s699 = sand.u32 %s224, 1
          %s700 = smul.addr %s699, 8
          %s701 = scalar_lea.vmem [#allocation16], %s700
          %702 = dma.done %s698, 128
        $region96: #{tpu_custom_call.1} parent=83 // pred_fallthru
          _
      $region84: #{tpu_custom_call.1} parent=5 // pred_fallthru
        _
    $region6: #{tpu_custom_call.1} parent=1 // loop_footer
      %s31 = sadd.s32 1, %s27
    $region7: #{tpu_custom_call.1} parent=1 // loop_footer_branch
      %26 = sbr.rel target = $region3
    $region8: #{tpu_custom_call.1} parent=1 // loop_exit
      _
    %703 = vsyncpa [#allocation3], 1
    %s704 = scalar_lea.sflag [#allocation3], 1
    %705 = vsyncpa %s704, 1
    %706 = vsyncpa [#allocation6], 1
    %707 = vsyncpa [#allocation9], 1
    %708 = vsyncpa [#allocation12], 1
    %709 = vsyncpa [#allocation4], 1
    %s710 = scalar_lea.sflag [#allocation4], 1
    %711 = vsyncpa %s710, 1
    %712 = vsyncpa [#allocation15], 1
    %s713 = scalar_lea.sflag [#allocation15], 1
    %714 = vsyncpa %s713, 1

</llo_original>
